<compile_context>
chip_gen: v7x
topology: tpu7x:2x2x1
jax: 0.10.0
libtpu: 0.0.40
codegen_flags: <defaults>
</compile_context>

<pallas_src>
import functools
import re
from typing import Dict, List

import jax
import jax.numpy as jnp
from jax import lax
from jax.experimental import pallas as pl
from jax.experimental.pallas import tpu as pltpu


def _round_up(x: int, m: int) -> int:
    return ((x + m - 1) // m) * m


# ----------------------------------------------------------------------------
# Pallas kernel
# ----------------------------------------------------------------------------
def _fwe_kernel(x_ref, fw_ref, w_ref, b_ref, o_ref, *, seq_len, tile_m):
    """Refs (per row tile):
      x_ref  : (tile_m, F)  f32   flattened input rows (B*S flattened)
      fw_ref : (1, F)       f32   feature weights (incl. temporal decay), resident
      w_ref  : (F, E)       bf16  projection weight, resident
      b_ref  : (1, E)       f32   projection bias, resident
      o_ref  : (tile_m, E)  f32   output embeddings
    """
    # cls rows are sequence index 0, i.e. flattened row index % S == 0.
    row0 = pl.program_id(0) * tile_m
    row_ids = row0 + lax.broadcasted_iota(jnp.int32, (tile_m, 1), 0)
    is_cls = (row_ids % seq_len) == 0                               # (tile_m, 1)

    # Per-row effective feature weights: 1.0 on cls rows, fw otherwise.
    eff_w = jnp.where(is_cls, jnp.float32(1.0), fw_ref[...])        # (tile_m, F)
    x_w = (x_ref[...] * eff_w).astype(jnp.bfloat16)                 # weight in f32, then quantize once

    out = jnp.dot(x_w, w_ref[...], preferred_element_type=jnp.float32)
    o_ref[...] = (out + b_ref[...]).astype(o_ref.dtype)


def featured_weighted_embedding(x, feature_weights, proj_w, proj_b, *, tile_m=8192):
    """x: (B, S, F) float32; feature_weights: (F,); proj_w: (F, E); proj_b: (E,)."""
    B, S, F = x.shape
    E = proj_w.shape[1]
    M = B * S

    # Tile-size policy: full-array block for tiny inputs (full-dim exception),
    # otherwise a multiple of 16 rows (bf16/(8,128) friendly).  tile_m is a
    # sweep knob; on v7x consider 16384.
    if M <= tile_m:
        tile_m = M
    else:
        tile_m = _round_up(max(16, tile_m), 16)
    grid = (pl.cdiv(M, tile_m),)   # ragged last block handled by Pallas (masked writes)

    # One-time parameter prep (tiny), no extra passes over x or the output.
    x2 = x.reshape(M, F)                                        # metadata-only
    fw = feature_weights.astype(jnp.float32).reshape(1, F)
    w = proj_w.astype(jnp.bfloat16)                             # (F, E) resident in VMEM
    b = proj_b.astype(jnp.float32).reshape(1, E)

    kernel = functools.partial(_fwe_kernel, seq_len=S, tile_m=tile_m)

    out = pl.pallas_call(
        kernel,
        out_shape=jax.ShapeDtypeStruct((M, E), jnp.float32),
        grid=grid,
        in_specs=[
            pl.BlockSpec((tile_m, F), lambda i: (i, 0)),        # x rows (streamed)
            pl.BlockSpec((1, F), lambda i: (0, 0)),             # feature weights (resident)
            pl.BlockSpec((F, E), lambda i: (0, 0)),             # projection weight (resident)
            pl.BlockSpec((1, E), lambda i: (0, 0)),             # bias (resident)
        ],
        out_specs=pl.BlockSpec((tile_m, E), lambda i: (i, 0)),  # un-padded, lane = full E
        compiler_params=pltpu.CompilerParams(
            dimension_semantics=("parallel",),                  # v7x: 2 TCs share the row axis
        ),
    )(x2, fw, w, b)

    return out.reshape(B, S, E)                                 # metadata-only


# ----------------------------------------------------------------------------
# Parameter construction (mirrors the PyTorch __init__)
# ----------------------------------------------------------------------------
def build_feature_weights(
    feature_names: List[str],
    init_weights: Dict[str, float] = None,
    decay_rate: float = 0.2,
) -> jnp.ndarray:
    num_features = len(feature_names)
    w = [1.0] * num_features
    if init_weights:
        for i, name in enumerate(feature_names):
            if name in init_weights:
                w[i] = float(init_weights[name])
    pattern = re.compile(r"_t-(\d+)$")
    offsets = []
    for name in feature_names:
        m = pattern.search(name)
        offsets.append(int(m.group(1)) if m else 0)
    w = jnp.asarray(w, dtype=jnp.float32)
    offsets = jnp.asarray(offsets, dtype=jnp.float32)
    decay = jnp.exp(-decay_rate * offsets)
    return w * decay


def build_proj_params(key, num_features: int, embed_dim: int):
    # Deterministic init mimicking nn.Linear's uniform(-1/sqrt(F), 1/sqrt(F)).
    kw, kb = jax.random.split(key)
    bound = 1.0 / jnp.sqrt(jnp.float32(num_features))
    # Stored as (F, E) so the kernel does x @ W directly (nn.Linear stores (E, F)).
    proj_w = jax.random.uniform(
        kw, (num_features, embed_dim), jnp.float32, -bound, bound
    )
    proj_b = jax.random.uniform(kb, (embed_dim,), jnp.float32, -bound, bound)
    return proj_w, proj_b


# Pure-JAX reference (f32) for a correctness check.
def reference(x, feature_weights, proj_w, proj_b):
    cls_row = x[:, :1, :]
    day_rows = x[:, 1:, :]
    weighted_days = day_rows * feature_weights.reshape(1, 1, -1)
    x_weighted = jnp.concatenate([cls_row, weighted_days], axis=1)
    return x_weighted @ proj_w + proj_b


# ----------------------------------------------------------------------------
# Demo
# ----------------------------------------------------------------------------
if __name__ == "__main__":
    feature_names = [
        "temp_t-0", "temp_t-1", "temp_t-2",
        "wind_t-0", "wind_t-1",
        "precip",
    ]
    init_weights = {"wind_t-0": 2.0, "precip": 0.5}
    decay_rate = 0.2

    B, T = 2, 8                 # batch, number of days
    S = T + 1                   # +1 for the cls token at index 0
    F = len(feature_names)      # 6
    E = 32                      # embed_dim

    key = jax.random.PRNGKey(0)
    kx, kp = jax.random.split(key)

    x = jax.random.normal(kx, (B, S, F), dtype=jnp.float32)
    feature_weights = build_feature_weights(feature_names, init_weights, decay_rate)
    proj_w, proj_b = build_proj_params(kp, F, E)

    out = featured_weighted_embedding(x, feature_weights, proj_w, proj_b)
    out = jax.block_until_ready(out)

    ref = reference(x, feature_weights, proj_w, proj_b)
    assert out.shape == (B, S, E)
    # bf16 MXU inputs (f32 accumulation, single quantization) vs f32 reference.
    assert jnp.allclose(out, ref, atol=5e-2, rtol=5e-2), float(
        jnp.max(jnp.abs(out - ref))
    )

    print("KERNEL_OK")
</pallas_src>

<mosaic_0001>
module attributes {stable_mosaic.version = 11 : i64} {
  func.func @_fwe_kernel(%arg0: i32, %arg1: memref<18x6xf32, #tpu.memory_space<vmem>>, %arg2: memref<1x6xf32, #tpu.memory_space<vmem>>, %arg3: memref<6x32xbf16, #tpu.memory_space<vmem>>, %arg4: memref<1x32xf32, #tpu.memory_space<vmem>>, %arg5: memref<18x32xf32, #tpu.memory_space<vmem>>) attributes {dimension_semantics = [#tpu.dimension_semantics<parallel>], iteration_bounds = array<i64: 1>, scalar_prefetch = 0 : i64, scratch_operands = 0 : i64, tpu.core_type = #tpu.core_type<tc>, window_params = [{transform_indices = @transform_0, window_bounds = array<i64: 18, 6>}, {pipeline_mode = #tpu.pipeline_mode<synchronous>, transform_indices = @transform_1, window_bounds = array<i64: 1, 6>}, {pipeline_mode = #tpu.pipeline_mode<synchronous>, transform_indices = @transform_2, window_bounds = array<i64: 6, 32>}, {pipeline_mode = #tpu.pipeline_mode<synchronous>, transform_indices = @transform_3, window_bounds = array<i64: 1, 32>}, {transform_indices = @transform_4, window_bounds = array<i64: 18, 32>}]} {
    %c18_i32 = arith.constant 18 : i32
    %0 = arith.muli %arg0, %c18_i32 : i32
    %1 = tpu.iota {dimensions = array<i32: 0>} : vector<18x1xi32>
    %2 = vector.broadcast %0 : i32 to vector<18x1xi32>
    %3 = arith.addi %2, %1 : vector<18x1xi32>
    %c9_i32 = arith.constant 9 : i32
    %c0_i32 = arith.constant 0 : i32
    %4 = arith.cmpi eq, %c9_i32, %c0_i32 : i32
    %c1_i32 = arith.constant 1 : i32
    %5 = arith.select %4, %c1_i32, %c9_i32 : i32
    %6 = vector.broadcast %5 : i32 to vector<18x1xi32>
    %7 = arith.remsi %3, %6 : vector<18x1xi32>
    %c0_i32_0 = arith.constant 0 : i32
    %8 = vector.broadcast %c0_i32_0 : i32 to vector<18x1xi32>
    %9 = arith.cmpi ne, %7, %8 : vector<18x1xi32>
    %c0_i32_1 = arith.constant 0 : i32
    %10 = vector.broadcast %c0_i32_1 : i32 to vector<18x1xi32>
    %11 = arith.cmpi slt, %7, %10 : vector<18x1xi32>
    %c0_i32_2 = arith.constant 0 : i32
    %12 = arith.cmpi slt, %5, %c0_i32_2 : i32
    %13 = vector.broadcast %12 : i1 to vector<18x1xi1>
    %14 = vector.broadcast %13 : vector<18x1xi1> to vector<18x1xi1>
    %15 = arith.xori %11, %14 : vector<18x1xi1>
    %16 = arith.andi %15, %9 : vector<18x1xi1>
    %17 = vector.broadcast %5 : i32 to vector<18x1xi32>
    %18 = arith.addi %7, %17 : vector<18x1xi32>
    %19 = arith.select %16, %18, %7 : vector<18x1xi1>, vector<18x1xi32>
    %c0_i32_3 = arith.constant 0 : i32
    %20 = vector.broadcast %c0_i32_3 : i32 to vector<18x1xi32>
    %21 = arith.cmpi eq, %19, %20 : vector<18x1xi32>
    %c0 = arith.constant 0 : index
    %c0_4 = arith.constant 0 : index
    %22 = vector.load %arg2[%c0, %c0_4] : memref<1x6xf32, #tpu.memory_space<vmem>>, vector<1x6xf32>
    %cst = arith.constant 1.000000e+00 : f32
    %23 = vector.shape_cast %21 : vector<18x1xi1> to vector<18x1xi1>
    %24 = vector.broadcast %23 : vector<18x1xi1> to vector<18x6xi1>
    %25 = vector.broadcast %cst : f32 to vector<18x6xf32>
    %26 = vector.shape_cast %22 : vector<1x6xf32> to vector<1x6xf32>
    %27 = vector.broadcast %26 : vector<1x6xf32> to vector<18x6xf32>
    %28 = arith.select %24, %25, %27 : vector<18x6xi1>, vector<18x6xf32>
    %c0_5 = arith.constant 0 : index
    %c0_6 = arith.constant 0 : index
    %29 = vector.load %arg1[%c0_5, %c0_6] : memref<18x6xf32, #tpu.memory_space<vmem>>, vector<18x6xf32>
    %30 = arith.mulf %29, %28 : vector<18x6xf32>
    %31 = arith.truncf %30 : vector<18x6xf32> to vector<18x6xbf16>
    %c0_7 = arith.constant 0 : index
    %c0_8 = arith.constant 0 : index
    %32 = vector.load %arg3[%c0_7, %c0_8] : memref<6x32xbf16, #tpu.memory_space<vmem>>, vector<6x32xbf16>
    %cst_9 = arith.constant dense<0.000000e+00> : vector<18x32xf32>
    %33 = tpu.matmul %31, %32, %cst_9 {dimension_numbers = #tpu.dot_dimension_numbers<[1], [0], [0], [1], [0, 0, 1, 1], [], []>} : vector<18x6xbf16>, vector<6x32xbf16>, vector<18x32xf32> -> vector<18x32xf32>
    %c0_10 = arith.constant 0 : index
    %c0_11 = arith.constant 0 : index
    %34 = vector.load %arg4[%c0_10, %c0_11] : memref<1x32xf32, #tpu.memory_space<vmem>>, vector<1x32xf32>
    %35 = vector.broadcast %34 : vector<1x32xf32> to vector<18x32xf32>
    %36 = arith.addf %33, %35 : vector<18x32xf32>
    %c0_12 = arith.constant 0 : index
    %c0_13 = arith.constant 0 : index
    %37 = vector.load %arg5[%c0_12, %c0_13] : memref<18x32xf32, #tpu.memory_space<vmem>>, vector<18x32xf32>
    tpu.vector_store %arg5[%c0_12, %c0_13], %36 {strides = array<i32>} : memref<18x32xf32, #tpu.memory_space<vmem>>, vector<18x32xf32>,
    return
  }
  func.func @transform_0(%arg0: i32) -> (i32, i32) {
    %c0_i32 = arith.constant 0 : i32
    %c0_i32_0 = arith.constant 0 : i32
    return %arg0, %c0_i32 : i32, i32
  }
  func.func @transform_1(%arg0: i32) -> (i32, i32) {
    %c0_i32 = arith.constant 0 : i32
    %c0_i32_0 = arith.constant 0 : i32
    %c0_i32_1 = arith.constant 0 : i32
    return %c0_i32, %c0_i32_0 : i32, i32
  }
  func.func @transform_2(%arg0: i32) -> (i32, i32) {
    %c0_i32 = arith.constant 0 : i32
    %c0_i32_0 = arith.constant 0 : i32
    %c0_i32_1 = arith.constant 0 : i32
    return %c0_i32, %c0_i32_0 : i32, i32
  }
  func.func @transform_3(%arg0: i32) -> (i32, i32) {
    %c0_i32 = arith.constant 0 : i32
    %c0_i32_0 = arith.constant 0 : i32
    %c0_i32_1 = arith.constant 0 : i32
    return %c0_i32, %c0_i32_0 : i32, i32
  }
  func.func @transform_4(%arg0: i32) -> (i32, i32) {
    %c0_i32 = arith.constant 0 : i32
    %c0_i32_0 = arith.constant 0 : i32
    return %arg0, %c0_i32 : i32, i32
  }
}

</mosaic_0001>

<llo_original>
// kernel: tpu_custom_call.1
$region0: #{tpu_custom_call.1}
  #allocation0 [shape = 'u32[]', space=smem, size = 0x4, offset = 0x4, fixed_abs, tag = 'smem constant byte address 0x4 - core index']
  #allocation1 [shape = 'u32[144,128]{1,0:T(1,128)}', space=vmem, size = 0x12000, scoped, tag = 'internal scratch']
  %s0 = inlined_call_operand.vmem [shape: f32[18,6], index: 0, kind: input, shape index: {}]
  %s1 = inlined_call_operand.vmem [shape: f32[1,6], index: 1, kind: input, shape index: {}]
  %s2 = inlined_call_operand.vmem [shape: bf16[6,32], index: 2, kind: input, shape index: {}]
  %s3 = inlined_call_operand.vmem [shape: f32[1,32], index: 3, kind: input, shape index: {}]
  %s4 = inlined_call_operand.hbm [shape: f32[18,32], index: 4, kind: output, shape index: {}]
  %s5 = sld [smem:[#allocation0]]
  $region26: #{tpu_custom_call.1} parent=0
    _
  %s7 = ssub.s32 1, %s5
  %s8 = scalar_select 0, %s7, %s5
  $region1: #{tpu_custom_call.1} parent=0
    #allocation2 [shape = 'u8[12288]{0}', space=vmem, size = 0x3000, scoped, tag = 'output window, operand 0, single buffered']
    #allocation3 [shape = 's32[1]{0}', space=sflag, size = 0x4, scoped, tag = 'scoped memory for tpu_custom_call.1']
    %9 = vsyncpa [#allocation3], 0
    // Predicated region
    $region2: #{tpu_custom_call.1} parent=1 // pred_check
      _
    $region3: #{tpu_custom_call.1} parent=1 // pred_check_branch
      %11 = sbr.rel (0) target = $region5
    $region4: #{tpu_custom_call.1} parent=1 // pred_region
      _
    $region5: #{tpu_custom_call.1} parent=1 // pred_fallthru
      _
    // Predicated region
    $region6: #{tpu_custom_call.1} parent=1 // pred_check
      _
    $region7: #{tpu_custom_call.1} parent=1 // pred_check_branch
      %13 = sbr.rel (0) target = $region9
    $region8: #{tpu_custom_call.1} parent=1 // pred_region
      _
    $region9: #{tpu_custom_call.1} parent=1 // pred_fallthru
      _
    // Predicated region
    $region10: #{tpu_custom_call.1} parent=1 // pred_check
      _
    $region11: #{tpu_custom_call.1} parent=1 // pred_check_branch
      %15 = sbr.rel (0) target = $region13
    $region12: #{tpu_custom_call.1} parent=1 // pred_region
      _
    $region13: #{tpu_custom_call.1} parent=1 // pred_fallthru
      _
    // Predicated region
    $region14: #{tpu_custom_call.1} parent=1 // pred_check
      _
    $region15: #{tpu_custom_call.1} parent=1 // pred_check_branch
      %17 = sbr.rel (0) target = $region17
    $region16: #{tpu_custom_call.1} parent=1 // pred_region
      _
    $region17: #{tpu_custom_call.1} parent=1 // pred_fallthru
      _
    %s19 = smul.u32 0, 18
    %v20 = vlaneseq
    %v21 = vshrl.u32 %v20, 7
    %v22 = vadd.s32 %v21, 8
    %v23 = vadd.s32 %v21, 16
    %v24 = vstv %s19
    %v25 = vadd.s32 %v24, %v21
    %v26 = vadd.s32 %v24, %v22
    %v27 = vadd.s32 %v24, %v23
    %vm28 = vcmp.lt.s32.totalorder %v25, 0
    %v29 = vsub.s32 0, %v25
    %v30 = vsel %vm28, %v29, %v25
    %v31 = vmul.u32.u64.compose %v30, 3817748708
    %v32 = vextract.low.u32 %v31
    %v33 = vextract.high.u32 %v31
    %v34 = vshrl.u32 %v33, 3
    %v35 = vmul.u32 %v34, 9
    %v36 = vsub.s32 %v30, %v35
    %v37 = vsub.s32 0, %v36
    %v38 = vsel %vm28, %v37, %v36
    %vm39 = vcmp.lt.s32.totalorder %v26, 0
    %v40 = vsub.s32 0, %v26
    %v41 = vsel %vm39, %v40, %v26
    %v42 = vmul.u32.u64.compose %v41, 3817748708
    %v43 = vextract.low.u32 %v42
    %v44 = vextract.high.u32 %v42
    %v45 = vshrl.u32 %v44, 3
    %v46 = vmul.u32 %v45, 9
    %v47 = vsub.s32 %v41, %v46
    %v48 = vsub.s32 0, %v47
    %v49 = vsel %vm39, %v48, %v47
    %vm50 = vcmp.lt.s32.totalorder %v27, 0
    %v51 = vsub.s32 0, %v27
    %v52 = vsel %vm50, %v51, %v27
    %v53 = vmul.u32.u64.compose %v52, 3817748708
    %v54 = vextract.low.u32 %v53
    %v55 = vextract.high.u32 %v53
    %v56 = vshrl.u32 %v55, 3
    %v57 = vmul.u32 %v56, 9
    %v58 = vsub.s32 %v52, %v57
    %v59 = vsub.s32 0, %v58
    %v60 = vsel %vm50, %v59, %v58
    %vm61 = vcmp.ne.s32.totalorder %v38, 0
    %vm62 = vcmp.ne.s32.totalorder %v49, 0
    %vm63 = vcmp.ne.s32.totalorder %v60, 0
    %vm64 = vcmp.lt.s32.totalorder %v38, 0
    %vm65 = vcmp.lt.s32.totalorder %v49, 0
    %vm66 = vcmp.lt.s32.totalorder %v60, 0
    %vm67 = vmand %vm64, %vm61
    %vm68 = vmand %vm65, %vm62
    %vm69 = vmand %vm66, %vm63
    %v70 = vadd.s32 %v38, 9
    %v71 = vadd.s32 %v49, 9
    %v72 = vadd.s32 %v60, 9
    %v73 = vsel %vm67, %v70, %v38
    %v74 = vsel %vm68, %v71, %v49
    %v75 = vsel %vm69, %v72, %v60
    %vm76 = vcmp.eq.s32.totalorder %v73, 0
    %vm77 = vcmp.eq.s32.totalorder %v74, 0
    %vm78 = vcmp.eq.s32.totalorder %v75, 0
    %v79 = vld [vmem:[%s1] sm:$0x1]
    %v80 = vsel %vm76, 1, 0
    %v81 = vsel %vm77, 1, 0
    %v82 = vsel %vm78, 1, 0
    %vm83 = vcmp.eq.s32.totalorder %v80, 1
    %vm84 = vcmp.eq.s32.totalorder %v81, 1
    %vm85 = vcmp.eq.s32.totalorder %v82, 1
    %v87 = vlaneseq
    %v88 = vshrl.u32 %v87, 7
    %v89 = vsub.s32 0, %v88
    %v90 = vrot.slane %v79, %v89
    %v92 = vsel %vm83, 1.0, %v90
    %v93 = vsel %vm84, 1.0, %v90
    %v94 = vsel %vm85, 1.0, %v90
    %v95 = vld [vmem:[%s0] sm:$0xff]
    %v96 = vld [vmem:[%s0 + $0x8] sm:$0xff]
    %v97 = vld [vmem:[%s0 + $0x10] sm:$0x3]
    %v98 = vmul.f32 %v95, %v92
    %v99 = vmul.f32 %v96, %v93
    %v100 = vmul.f32 %v97, %v94
    %v101 = vpack.c.bf16 %v99, %v98
    %v102 = vpack.c.bf16 %v100, %v100
    %v103 = vld [vmem:[%s2] sm:$0x7]
    %v104 = vld [vmem:[%s3] sm:$0x1]
    %v106 = vlaneseq
    %v107 = vshrl.u32 %v106, 7
    %v108 = vsub.s32 0, %v107
    %v109 = vrot.slane %v104, %v108
    %vm111 = vcmask 48128
    %v113 = vsel %vm111, %v101, 0
    %v116 = vsel %vm111, %v102, 0
    %vm118 = vcmask 1042432
    %v120 = vsel %vm118, %v103, 0
    %122 = vmatprep.subr.bf16.mxu0 0
    %123 = vmatpush1.bf16.msra.mxu0 %v120
    %124 = vmatprep.subr.bf16.mxu0 0
    %125 = vmatpush1.bf16.msra.mxu0 0
    %126 = vmatprep.subr.bf16.mxu0 0
    %127 = vmatpush1.bf16.msra.mxu0 0
    %128 = vmatprep.subr.bf16.mxu0 0
    %129 = vmatpush1.bf16.msra.mxu0 0
    %130 = vmatprep.subr.bf16.mxu0 0
    %131 = vmatpush1.bf16.msra.mxu0 0
    %132 = vmatprep.subr.bf16.mxu0 0
    %133 = vmatpush1.bf16.msra.mxu0 0
    %134 = vmatprep.subr.bf16.mxu0 0
    %135 = vmatpush1.bf16.msra.mxu0 0
    %136 = vmatprep.subr.bf16.mxu0 0
    %137 = vmatpush1.bf16.msra.mxu0 0
    %138 = vmatprep.subr.bf16.mxu0 0
    %139 = vmatpush1.bf16.msra.mxu0 0
    %140 = vmatprep.subr.bf16.mxu0 0
    %141 = vmatpush1.bf16.msra.mxu0 0
    %142 = vmatprep.subr.bf16.mxu0 0
    %143 = vmatpush1.bf16.msra.mxu0 0
    %144 = vmatprep.subr.bf16.mxu0 0
    %145 = vmatpush1.bf16.msra.mxu0 0
    %146 = vmatprep.subr.bf16.mxu0 0
    %147 = vmatpush1.bf16.msra.mxu0 0
    %148 = vmatprep.subr.bf16.mxu0 0
    %149 = vmatpush1.bf16.msra.mxu0 0
    %150 = vmatprep.subr.bf16.mxu0 0
    %151 = vmatpush1.bf16.msra.mxu0 0
    %152 = vmatprep.subr.bf16.mxu0 0
    %153 = vmatpush1.bf16.msra.mxu0 0
    %154 = vmatprep.mubr.bf16.mxu0 0
    %155 = vmatmul.mubr.bf16.gmra.mrb[0].mxu0 %v113
    %v156 = vpop.f32.mrb[0].mxu0
    %v157 = vadd.f32 %v109, %v156
    %v158 = vpop.f32.mrb[0].mxu0
    %v159 = vpop.f32.mrb[0].mxu0
    %v160 = vadd.f32 %v109, %v159
    %v161 = vpop.f32.mrb[0].mxu0
    %162 = vmatprep.mubr.bf16.mxu0 0
    %163 = vmatmul.mubr.bf16.gmra.mrb[0].mxu0 %v116
    %v164 = vpop.f32.mrb[0].mxu0
    %v165 = vadd.f32 %v109, %v164
    %v166 = vpop.f32.mrb[0].mxu0
    %v167 = vpop.f32.mrb[0].mxu0
    %v168 = vpop.f32.mrb[0].mxu0
    %169 = vdwg.mxu0
    %vm170 = vcmask 261120
    %171 = vst.msk [vmem:[#allocation2] sm:$0xff] %vm170, %v157
    %172 = vst.msk [vmem:[#allocation2 + $0x8] sm:$0xff] %vm170, %v160
    %vm173 = vcmask 254976
    %174 = vst.msk [vmem:[#allocation2 + $0x10] sm:$0x3] %vm173, %v165
    // Predicated region
    $region18: #{tpu_custom_call.1} parent=1 // pred_check
      _
    $region19: #{tpu_custom_call.1} parent=1 // pred_check_branch
      %176 = sbr.rel (0) target = $region21
    $region20: #{tpu_custom_call.1} parent=1 // pred_region
      %s178 = ssub.s32 384, 384
      %179 = vsyncadd [#allocation3], %s178
      %s180 = sshll.u32 [#allocation2], 4
      %s181 = int_to_ptr.vmem [resolvable:$true] %s180
      %186 = dma.vmem_to_hbm [thread:$0]  %s181, 384, %s4, [#allocation3], 128, 128, 8
    $region21: #{tpu_custom_call.1} parent=1 // pred_fallthru
      _
    // Predicated region
    $region22: #{tpu_custom_call.1} parent=1 // pred_check
      _
    $region23: #{tpu_custom_call.1} parent=1 // pred_check_branch
      %188 = sbr.rel (0) target = $region25
    $region24: #{tpu_custom_call.1} parent=1 // pred_region
      %189 = dma.done [#allocation3], 384
    $region25: #{tpu_custom_call.1} parent=1 // pred_fallthru
      _
    %190 = vsyncpa [#allocation3], 1

</llo_original>
